<compile_context>
chip_gen: v5e
topology: v5e:2x2
jax: 0.10.0
libtpu: 0.0.40
codegen_flags: <defaults>
</compile_context>

<pallas_src>
import functools
import math

import jax
import jax.numpy as jnp
from jax.experimental import pallas as pl
from jax.experimental.pallas import tpu as pltpu


# ----------------------------------------------------------------------------
# Gabor filter construction (tiny, plain JAX)
# ----------------------------------------------------------------------------
def gabor_fn(kernel_size, channel_in, channel_out, sigma, theta, Lambda, psi, gamma):
    """Direct JAX port of the PyTorch gabor_fn (conv-weight construction)."""
    sigma_x = sigma
    sigma_y = sigma / gamma
    half = kernel_size // 2
    ksize = 2 * half + 1
    coords = jnp.arange(-half, half + 1, dtype=jnp.float32)
    # y varies along the last axis, x along the second-to-last (matches torch).
    y = jnp.broadcast_to(coords.reshape(1, 1, 1, ksize),
                         (channel_out, channel_in, ksize, ksize))
    x = jnp.broadcast_to(coords.reshape(1, 1, ksize, 1),
                         (channel_out, channel_in, ksize, ksize))
    th = theta.reshape(-1, 1, 1, 1)
    x_theta = x * jnp.cos(th) + y * jnp.sin(th)
    y_theta = -x * jnp.sin(th) + y * jnp.cos(th)
    gb = jnp.exp(
        -0.5 * (x_theta ** 2 / sigma_x.reshape(-1, 1, 1, 1) ** 2
                + y_theta ** 2 / sigma_y.reshape(-1, 1, 1, 1) ** 2)
    ) * jnp.cos(2.0 * math.pi / Lambda.reshape(-1, 1, 1, 1) * x_theta
                + psi.reshape(-1, 1, 1, 1))
    return gb


def make_gabor_kernel(params, kernel_size, channel_in):
    """Parameter transforms from GaborConv2d.forward + gabor_fn."""
    theta = jax.nn.sigmoid(params["theta"]) * math.pi * 2.0
    gamma = 1.0 + params["gamma"] * 0.5
    sigma = 0.1 + jax.nn.sigmoid(params["sigma"]) * 0.4
    Lambda = 0.001 + jax.nn.sigmoid(params["Lambda"]) * 0.999
    psi = params["psi"]
    channel_out = theta.shape[0]
    kernel = gabor_fn(kernel_size, channel_in, channel_out,
                      sigma, theta, Lambda, psi, gamma)
    return kernel.astype(jnp.float32)        # (C_out, C_in, KH, KW)


# ----------------------------------------------------------------------------
# Pallas kernel: fused im2col + matmul on lane-dense tiles of the wide output.
# ----------------------------------------------------------------------------
def _gabor_conv_kernel(w_ref, xa_ref, xb_ref, o_ref, win_ref, *,
                       taps, lane_tile, stride, halo):
    # w_ref  : (KH*KW, C_out_p, C_in) f32  - Gabor filters, resident
    # xa_ref : (C_in, tile_in) f32         - current flattened-input lane block
    # xb_ref : (C_in, tile_in) f32         - next block (halo for the tap shifts)
    # o_ref  : (C_out_p, lane_tile) f32    - lane-dense tile of the wide output
    # win_ref: (C_in, tile_in + halo) f32  - VMEM scratch: block + halo window
    tile_in = xa_ref.shape[1]
    win_ref[:, :tile_in] = xa_ref[...]
    win_ref[:, tile_in:] = xb_ref[:, :halo]

    acc = jnp.zeros(o_ref.shape, jnp.float32)
    for t, off in enumerate(taps):            # static unroll over KH*KW taps
        if stride == 1:
            p = win_ref[:, off:off + lane_tile]                 # (C_in, lane_tile)
        else:
            # TODO(synk): stride > 1 uses a strided VMEM load; correct but untuned.
            p = win_ref[:, pl.ds(off, lane_tile, stride)]
        acc = acc + jnp.dot(w_ref[t], p, preferred_element_type=jnp.float32)
    o_ref[...] = acc


def _round_up(a, b):
    return ((a + b - 1) // b) * b


def _vmem_limit_bytes():
    """Scoped-VMEM limit ~ half of physical: 64 MiB on v5e/v6e (128 MiB parts),
    32 MiB on v7x (64 MiB parts).  Conservative fallback if the query fails."""
    try:
        cap = int(pltpu.get_tpu_info().vmem_capacity_bytes)
    except Exception:
        cap = 64 * 1024 * 1024
    return max(16 * 1024 * 1024, min(cap // 2, 96 * 1024 * 1024))


def _pick_lane_tile(L_wide, N, c_in, c_out_p, stride, max_off, tile_budget):
    """Lane tile (multiple of 128) of the wide output, sized from a VMEM byte
    budget (big tiles amortize the ~0.35us/step grid cost), while keeping
    >= 4 parallel grid steps overall (v7x has 2 TensorCores) and >= the halo
    so one neighbour block covers every KHxKW tap shift."""
    L_wide_r = _round_up(max(L_wide, 1), 128)
    min_tile = max(128, _round_up(max_off, 128))
    # f32 bytes per output lane that scale with the tile:
    #   2 input specs x 2 pipeline buffers + window scratch + tap slice (~c_in),
    #   double-buffered output + f32 accumulator (~c_out_p each).
    per_lane = 4 * (5 * c_in * stride + c_in + 3 * c_out_p)
    cap = max(min_tile, (tile_budget // per_lane) // 128 * 128)
    want_tiles = max(1, -(-4 // max(N, 1)))          # ceil(4 / N)
    tile = max(128, _round_up(-(-L_wide_r // want_tiles), 128))
    tile = max(min(tile, cap, L_wide_r), min_tile)
    n = -(-L_wide // tile)
    return tile, n


def gabor_conv2d(x, params, *, kernel_size, stride=1, padding=0):
    """Forward pass of GaborConv2d.  x: (N, C_in, H, W) float32, NCHW."""
    N, C_in, H, W = x.shape
    kernel = make_gabor_kernel(params, kernel_size, C_in)   # (C_out, C_in, KH, KW)
    C_out = kernel.shape[0]
    KH = KW = kernel_size
    H_pad, W_pad = H + 2 * padding, W + 2 * padding
    Ho = (H_pad - KH) // stride + 1
    Wo = (W_pad - KW) // stride + 1
    assert Ho > 0 and Wo > 0, "empty conv output"

    C_out_p = _round_up(C_out, 8)

    # Weights -> (KH*KW, C_out_p, C_in), tap-major (t = dy*KW + dx).
    w = jnp.transpose(kernel, (2, 3, 0, 1)).reshape(KH * KW, C_out, C_in)
    if C_out_p != C_out:
        w = jnp.pad(w, ((0, 0), (0, C_out_p - C_out), (0, 0)))

    # "Wide" output lane space: Ho rows x W_pad columns per image.  Lane
    # l = h*W_pad + c maps to the input window starting at flat offset
    # stride*l + dy*W_pad + dx; columns c in [Wo, W_pad) wrap across rows and
    # are cropped afterwards.
    L_wide = Ho * W_pad
    max_off = (KH - 1) * W_pad + (KW - 1)

    vmem_limit = _vmem_limit_bytes()
    lane_tile, n_lane = _pick_lane_tile(L_wide, N, C_in, C_out_p, stride,
                                        max_off, vmem_limit // 2)
    L_wide_pad = lane_tile * n_lane
    tile_in = lane_tile * stride
    halo = _round_up(max_off, 128)

    # Zero-pad spatially, flatten, and size the flat length so every
    # (block l, block l+1) window is in bounds (junk lanes read zeros).
    xp = x
    if padding > 0:
        xp = jnp.pad(x, ((0, 0), (0, 0), (padding, padding), (padding, padding)))
    x_flat = xp.reshape(N, C_in, H_pad * W_pad)
    L_flat = (n_lane + 1) * tile_in
    if L_flat >= H_pad * W_pad:
        x_flat = jnp.pad(x_flat, ((0, 0), (0, 0), (0, L_flat - H_pad * W_pad)))
    else:
        x_flat = x_flat[:, :, :L_flat]       # dropped tail is never read

    taps = tuple(dy * W_pad + dx for dy in range(KH) for dx in range(KW))
    kernel_fn = functools.partial(_gabor_conv_kernel, taps=taps,
                                  lane_tile=lane_tile, stride=stride, halo=halo)

    cost = pl.CostEstimate(
        flops=2 * N * L_wide_pad * C_out_p * C_in * KH * KW,
        transcendentals=0,
        bytes_accessed=2 * N * C_in * L_flat * 4 + int(w.size) * 4
                       + N * C_out_p * L_wide_pad * 4,
    )

    out_wide = pl.pallas_call(
        kernel_fn,
        out_shape=jax.ShapeDtypeStruct((N, C_out_p, L_wide_pad), jnp.float32),
        grid=(N, n_lane),
        in_specs=[
            # Gabor weights: tiny, resident across the whole grid.
            pl.BlockSpec((KH * KW, C_out_p, C_in), lambda n, l: (0, 0, 0)),
            # Current input lane block and its right neighbour (halo source).
            pl.BlockSpec((None, C_in, tile_in), lambda n, l: (n, 0, l)),
            pl.BlockSpec((None, C_in, tile_in), lambda n, l: (n, 0, l + 1)),
        ],
        out_specs=pl.BlockSpec((None, C_out_p, lane_tile), lambda n, l: (n, 0, l)),
        scratch_shapes=[pltpu.VMEM((C_in, tile_in + halo), jnp.float32)],
        compiler_params=pltpu.CompilerParams(
            dimension_semantics=("parallel", "parallel"),
            vmem_limit_bytes=int(vmem_limit),
        ),
        cost_estimate=cost,
    )(w, x_flat, x_flat)

    # Crop channel / lane padding and the wrap-around columns; already NCHW.
    out = out_wide[:, :C_out, :L_wide].reshape(N, C_out, Ho, W_pad)[:, :, :, :Wo]
    return out


if __name__ == "__main__":
    # Small config consistent with GaborConv2d(channel_in, channel_out, k).
    N, C_in, C_out, H, W = 2, 4, 8, 16, 16
    kernel_size, stride, padding = 3, 1, 1

    key = jax.random.PRNGKey(0)
    k1, k2, k3, k4, k5, kx = jax.random.split(key, 6)
    # Deterministic parameter init mirroring the PyTorch __init__ shapes/scales.
    params = {
        "Lambda": jax.random.uniform(k1, (C_out,), jnp.float32),        # torch.rand
        "theta":  jax.random.normal(k2, (C_out,), jnp.float32) * 1.0,   # randn * 1.0
        "psi":    jax.random.normal(k3, (C_out,), jnp.float32) * 0.02,  # randn * 0.02
        "sigma":  jax.random.normal(k4, (C_out,), jnp.float32) * 1.0,   # randn * 1.0
        "gamma":  jax.random.normal(k5, (C_out,), jnp.float32) * 0.0,   # randn * 0.0
    }
    x = jax.random.normal(kx, (N, C_in, H, W), jnp.float32)

    fwd = jax.jit(functools.partial(gabor_conv2d, kernel_size=kernel_size,
                                    stride=stride, padding=padding))
    out = jax.block_until_ready(fwd(x, params))

    Ho = (H + 2 * padding - kernel_size) // stride + 1
    Wo = (W + 2 * padding - kernel_size) // stride + 1
    assert out.shape == (N, C_out, Ho, Wo), out.shape

    # f32 reference (matches the PyTorch module's float conv numerics).
    ref_kernel = make_gabor_kernel(params, kernel_size, C_in)
    ref = jax.lax.conv_general_dilated(
        x, ref_kernel, window_strides=(stride, stride),
        padding=[(padding, padding), (padding, padding)],
        dimension_numbers=("NCHW", "OIHW", "NCHW"),
        preferred_element_type=jnp.float32,
        precision=jax.lax.Precision.HIGHEST)
    assert jnp.allclose(out, ref, atol=1e-3, rtol=1e-3), \
        float(jnp.max(jnp.abs(out - ref)))

    print("KERNEL_OK")
</pallas_src>

<mosaic_0001>
module attributes {stable_mosaic.version = 11 : i64} {
  func.func @_gabor_conv_kernel(%arg0: i32, %arg1: i32, %arg2: memref<9x8x4xf32, #tpu.memory_space<vmem>>, %arg3: memref<1x4x256xf32, #tpu.memory_space<vmem>>, %arg4: memref<1x4x256xf32, #tpu.memory_space<vmem>>, %arg5: memref<1x8x256xf32, #tpu.memory_space<vmem>>, %arg6: memref<4x384xf32, #tpu.memory_space<vmem>>) attributes {dimension_semantics = [#tpu.dimension_semantics<parallel>, #tpu.dimension_semantics<parallel>], iteration_bounds = array<i64: 2, 2>, scalar_prefetch = 0 : i64, scratch_operands = 1 : i64, tpu.core_type = #tpu.core_type<tc>, window_params = [{pipeline_mode = #tpu.pipeline_mode<synchronous>, transform_indices = @transform_0, window_bounds = array<i64: 9, 8, 4>}, {transform_indices = @transform_1, window_bounds = array<i64: 1, 4, 256>}, {transform_indices = @transform_2, window_bounds = array<i64: 1, 4, 256>}, {transform_indices = @transform_3, window_bounds = array<i64: 1, 8, 256>}]} {
    %c0 = arith.constant 0 : index
    %c0_0 = arith.constant 0 : index
    %c0_1 = arith.constant 0 : index
    %0 = vector.load %arg3[%c0, %c0_0, %c0_1] : memref<1x4x256xf32, #tpu.memory_space<vmem>>, vector<1x4x256xf32>
    %1 = vector.shape_cast %0 : vector<1x4x256xf32> to vector<4x256xf32>
    %c0_2 = arith.constant 0 : index
    %c0_3 = arith.constant 0 : index
    %2 = vector.load %arg6[%c0_2, %c0_3] : memref<4x384xf32, #tpu.memory_space<vmem>>, vector<4x256xf32>
    tpu.vector_store %arg6[%c0_2, %c0_3], %1 {strides = array<i32>} : memref<4x384xf32, #tpu.memory_space<vmem>>, vector<4x256xf32>,
    %c0_4 = arith.constant 0 : index
    %c0_5 = arith.constant 0 : index
    %c0_6 = arith.constant 0 : index
    %3 = vector.load %arg4[%c0_4, %c0_5, %c0_6] : memref<1x4x256xf32, #tpu.memory_space<vmem>>, vector<1x4x128xf32>
    %4 = vector.shape_cast %3 : vector<1x4x128xf32> to vector<4x128xf32>
    %c0_7 = arith.constant 0 : index
    %c256 = arith.constant 256 : index
    %5 = vector.load %arg6[%c0_7, %c256] : memref<4x384xf32, #tpu.memory_space<vmem>>, vector<4x128xf32>
    tpu.vector_store %arg6[%c0_7, %c256], %4 {strides = array<i32>} : memref<4x384xf32, #tpu.memory_space<vmem>>, vector<4x128xf32>,
    %cst = arith.constant 0.000000e+00 : f32
    %6 = vector.broadcast %cst : f32 to vector<8x256xf32>
    %c0_8 = arith.constant 0 : index
    %c0_9 = arith.constant 0 : index
    %7 = vector.load %arg6[%c0_8, %c0_9] : memref<4x384xf32, #tpu.memory_space<vmem>>, vector<4x256xf32>
    %c0_10 = arith.constant 0 : index
    %c0_11 = arith.constant 0 : index
    %c0_12 = arith.constant 0 : index
    %8 = vector.load %arg2[%c0_10, %c0_11, %c0_12] : memref<9x8x4xf32, #tpu.memory_space<vmem>>, vector<1x8x4xf32>
    %9 = vector.shape_cast %8 : vector<1x8x4xf32> to vector<8x4xf32>
    %cst_13 = arith.constant dense<0.000000e+00> : vector<8x256xf32>
    %10 = tpu.matmul %9, %7, %cst_13 {dimension_numbers = #tpu.dot_dimension_numbers<[1], [0], [0], [1], [0, 0, 1, 1], [], []>} : vector<8x4xf32>, vector<4x256xf32>, vector<8x256xf32> -> vector<8x256xf32>
    %11 = arith.addf %6, %10 : vector<8x256xf32>
    %c0_14 = arith.constant 0 : index
    %c1 = arith.constant 1 : index
    %12 = vector.load %arg6[%c0_14, %c1] : memref<4x384xf32, #tpu.memory_space<vmem>>, vector<4x256xf32>
    %c1_15 = arith.constant 1 : index
    %c0_16 = arith.constant 0 : index
    %c0_17 = arith.constant 0 : index
    %13 = vector.load %arg2[%c1_15, %c0_16, %c0_17] : memref<9x8x4xf32, #tpu.memory_space<vmem>>, vector<1x8x4xf32>
    %14 = vector.shape_cast %13 : vector<1x8x4xf32> to vector<8x4xf32>
    %cst_18 = arith.constant dense<0.000000e+00> : vector<8x256xf32>
    %15 = tpu.matmul %14, %12, %cst_18 {dimension_numbers = #tpu.dot_dimension_numbers<[1], [0], [0], [1], [0, 0, 1, 1], [], []>} : vector<8x4xf32>, vector<4x256xf32>, vector<8x256xf32> -> vector<8x256xf32>
    %16 = arith.addf %11, %15 : vector<8x256xf32>
    %c0_19 = arith.constant 0 : index
    %c2 = arith.constant 2 : index
    %17 = vector.load %arg6[%c0_19, %c2] : memref<4x384xf32, #tpu.memory_space<vmem>>, vector<4x256xf32>
    %c2_20 = arith.constant 2 : index
    %c0_21 = arith.constant 0 : index
    %c0_22 = arith.constant 0 : index
    %18 = vector.load %arg2[%c2_20, %c0_21, %c0_22] : memref<9x8x4xf32, #tpu.memory_space<vmem>>, vector<1x8x4xf32>
    %19 = vector.shape_cast %18 : vector<1x8x4xf32> to vector<8x4xf32>
    %cst_23 = arith.constant dense<0.000000e+00> : vector<8x256xf32>
    %20 = tpu.matmul %19, %17, %cst_23 {dimension_numbers = #tpu.dot_dimension_numbers<[1], [0], [0], [1], [0, 0, 1, 1], [], []>} : vector<8x4xf32>, vector<4x256xf32>, vector<8x256xf32> -> vector<8x256xf32>
    %21 = arith.addf %16, %20 : vector<8x256xf32>
    %c0_24 = arith.constant 0 : index
    %c18 = arith.constant 18 : index
    %22 = vector.load %arg6[%c0_24, %c18] : memref<4x384xf32, #tpu.memory_space<vmem>>, vector<4x256xf32>
    %c3 = arith.constant 3 : index
    %c0_25 = arith.constant 0 : index
    %c0_26 = arith.constant 0 : index
    %23 = vector.load %arg2[%c3, %c0_25, %c0_26] : memref<9x8x4xf32, #tpu.memory_space<vmem>>, vector<1x8x4xf32>
    %24 = vector.shape_cast %23 : vector<1x8x4xf32> to vector<8x4xf32>
    %cst_27 = arith.constant dense<0.000000e+00> : vector<8x256xf32>
    %25 = tpu.matmul %24, %22, %cst_27 {dimension_numbers = #tpu.dot_dimension_numbers<[1], [0], [0], [1], [0, 0, 1, 1], [], []>} : vector<8x4xf32>, vector<4x256xf32>, vector<8x256xf32> -> vector<8x256xf32>
    %26 = arith.addf %21, %25 : vector<8x256xf32>
    %c0_28 = arith.constant 0 : index
    %c19 = arith.constant 19 : index
    %27 = vector.load %arg6[%c0_28, %c19] : memref<4x384xf32, #tpu.memory_space<vmem>>, vector<4x256xf32>
    %c4 = arith.constant 4 : index
    %c0_29 = arith.constant 0 : index
    %c0_30 = arith.constant 0 : index
    %28 = vector.load %arg2[%c4, %c0_29, %c0_30] : memref<9x8x4xf32, #tpu.memory_space<vmem>>, vector<1x8x4xf32>
    %29 = vector.shape_cast %28 : vector<1x8x4xf32> to vector<8x4xf32>
    %cst_31 = arith.constant dense<0.000000e+00> : vector<8x256xf32>
    %30 = tpu.matmul %29, %27, %cst_31 {dimension_numbers = #tpu.dot_dimension_numbers<[1], [0], [0], [1], [0, 0, 1, 1], [], []>} : vector<8x4xf32>, vector<4x256xf32>, vector<8x256xf32> -> vector<8x256xf32>
    %31 = arith.addf %26, %30 : vector<8x256xf32>
    %c0_32 = arith.constant 0 : index
    %c20 = arith.constant 20 : index
    %32 = vector.load %arg6[%c0_32, %c20] : memref<4x384xf32, #tpu.memory_space<vmem>>, vector<4x256xf32>
    %c5 = arith.constant 5 : index
    %c0_33 = arith.constant 0 : index
    %c0_34 = arith.constant 0 : index
    %33 = vector.load %arg2[%c5, %c0_33, %c0_34] : memref<9x8x4xf32, #tpu.memory_space<vmem>>, vector<1x8x4xf32>
    %34 = vector.shape_cast %33 : vector<1x8x4xf32> to vector<8x4xf32>
    %cst_35 = arith.constant dense<0.000000e+00> : vector<8x256xf32>
    %35 = tpu.matmul %34, %32, %cst_35 {dimension_numbers = #tpu.dot_dimension_numbers<[1], [0], [0], [1], [0, 0, 1, 1], [], []>} : vector<8x4xf32>, vector<4x256xf32>, vector<8x256xf32> -> vector<8x256xf32>
    %36 = arith.addf %31, %35 : vector<8x256xf32>
    %c0_36 = arith.constant 0 : index
    %c36 = arith.constant 36 : index
    %37 = vector.load %arg6[%c0_36, %c36] : memref<4x384xf32, #tpu.memory_space<vmem>>, vector<4x256xf32>
    %c6 = arith.constant 6 : index
    %c0_37 = arith.constant 0 : index
    %c0_38 = arith.constant 0 : index
    %38 = vector.load %arg2[%c6, %c0_37, %c0_38] : memref<9x8x4xf32, #tpu.memory_space<vmem>>, vector<1x8x4xf32>
    %39 = vector.shape_cast %38 : vector<1x8x4xf32> to vector<8x4xf32>
    %cst_39 = arith.constant dense<0.000000e+00> : vector<8x256xf32>
    %40 = tpu.matmul %39, %37, %cst_39 {dimension_numbers = #tpu.dot_dimension_numbers<[1], [0], [0], [1], [0, 0, 1, 1], [], []>} : vector<8x4xf32>, vector<4x256xf32>, vector<8x256xf32> -> vector<8x256xf32>
    %41 = arith.addf %36, %40 : vector<8x256xf32>
    %c0_40 = arith.constant 0 : index
    %c37 = arith.constant 37 : index
    %42 = vector.load %arg6[%c0_40, %c37] : memref<4x384xf32, #tpu.memory_space<vmem>>, vector<4x256xf32>
    %c7 = arith.constant 7 : index
    %c0_41 = arith.constant 0 : index
    %c0_42 = arith.constant 0 : index
    %43 = vector.load %arg2[%c7, %c0_41, %c0_42] : memref<9x8x4xf32, #tpu.memory_space<vmem>>, vector<1x8x4xf32>
    %44 = vector.shape_cast %43 : vector<1x8x4xf32> to vector<8x4xf32>
    %cst_43 = arith.constant dense<0.000000e+00> : vector<8x256xf32>
    %45 = tpu.matmul %44, %42, %cst_43 {dimension_numbers = #tpu.dot_dimension_numbers<[1], [0], [0], [1], [0, 0, 1, 1], [], []>} : vector<8x4xf32>, vector<4x256xf32>, vector<8x256xf32> -> vector<8x256xf32>
    %46 = arith.addf %41, %45 : vector<8x256xf32>
    %c0_44 = arith.constant 0 : index
    %c38 = arith.constant 38 : index
    %47 = vector.load %arg6[%c0_44, %c38] : memref<4x384xf32, #tpu.memory_space<vmem>>, vector<4x256xf32>
    %c8 = arith.constant 8 : index
    %c0_45 = arith.constant 0 : index
    %c0_46 = arith.constant 0 : index
    %48 = vector.load %arg2[%c8, %c0_45, %c0_46] : memref<9x8x4xf32, #tpu.memory_space<vmem>>, vector<1x8x4xf32>
    %49 = vector.shape_cast %48 : vector<1x8x4xf32> to vector<8x4xf32>
    %cst_47 = arith.constant dense<0.000000e+00> : vector<8x256xf32>
    %50 = tpu.matmul %49, %47, %cst_47 {dimension_numbers = #tpu.dot_dimension_numbers<[1], [0], [0], [1], [0, 0, 1, 1], [], []>} : vector<8x4xf32>, vector<4x256xf32>, vector<8x256xf32> -> vector<8x256xf32>
    %51 = arith.addf %46, %50 : vector<8x256xf32>
    %c0_48 = arith.constant 0 : index
    %c0_49 = arith.constant 0 : index
    %c0_50 = arith.constant 0 : index
    %52 = vector.load %arg5[%c0_48, %c0_49, %c0_50] : memref<1x8x256xf32, #tpu.memory_space<vmem>>, vector<1x8x256xf32>
    %53 = vector.shape_cast %52 : vector<1x8x256xf32> to vector<8x256xf32>
    %54 = vector.shape_cast %51 : vector<8x256xf32> to vector<1x8x256xf32>
    tpu.vector_store %arg5[%c0_48, %c0_49, %c0_50], %54 {strides = array<i32>} : memref<1x8x256xf32, #tpu.memory_space<vmem>>, vector<1x8x256xf32>,
    return
  }
  func.func @transform_0(%arg0: i32, %arg1: i32) -> (i32, i32, i32) {
    %c0_i32 = arith.constant 0 : i32
    %c0_i32_0 = arith.constant 0 : i32
    %c0_i32_1 = arith.constant 0 : i32
    %c0_i32_2 = arith.constant 0 : i32
    return %c0_i32, %c0_i32_0, %c0_i32_1 : i32, i32, i32
  }
  func.func @transform_1(%arg0: i32, %arg1: i32) -> (i32, i32, i32) {
    %c0_i32 = arith.constant 0 : i32
    %c0_i32_0 = arith.constant 0 : i32
    return %arg0, %c0_i32, %arg1 : i32, i32, i32
  }
  func.func @transform_2(%arg0: i32, %arg1: i32) -> (i32, i32, i32) {
    %c1_i32 = arith.constant 1 : i32
    %0 = arith.addi %arg1, %c1_i32 : i32
    %c0_i32 = arith.constant 0 : i32
    %c0_i32_0 = arith.constant 0 : i32
    return %arg0, %c0_i32, %0 : i32, i32, i32
  }
  func.func @transform_3(%arg0: i32, %arg1: i32) -> (i32, i32, i32) {
    %c0_i32 = arith.constant 0 : i32
    %c0_i32_0 = arith.constant 0 : i32
    return %arg0, %c0_i32, %arg1 : i32, i32, i32
  }
}

</mosaic_0001>

<llo_original>
// kernel: gabor_conv2d.1
$region0: #{gabor_conv2d.1}
  #allocation0 [shape = 'u32[]', space=smem, size = 0x4, offset = 0x4, fixed_abs, tag = 'smem constant byte address 0x4 - core index']
  #allocation1 [shape = 'u32[72,128]{1,0:T(1,128)}', space=vmem, size = 0x9000, scoped, tag = 'internal scratch']
  #allocation2 [shape = 'f32[4,384]{1,0:T(4,128)}', space=vmem, size = 0x1800, scoped, tag = 'scratch operand']
  %s0 = inlined_call_operand.vmem [shape: f32[9,8,4], index: 0, kind: input, shape index: {}]
  %s1 = inlined_call_operand.vmem [shape: f32[2,4,768], index: 1, kind: input, shape index: {}, may-alias: {1,2}]
  %s2 = inlined_call_operand.vmem [shape: f32[2,4,768], index: 2, kind: input, shape index: {}, may-alias: {1,2}]
  %s3 = inlined_call_operand.vmem [shape: f32[2,8,512], index: 3, kind: output, shape index: {}]
  %s4 = sld [smem:[#allocation0]]
  $region45: #{gabor_conv2d.1} parent=0
    _
  %s6 = ssub.s32 1, %s4
  %s7 = scalar_select 0, %s6, %s4
  loop: start=0, step=1, limit=6
  $region2: #{gabor_conv2d.1} parent=0 // loop_pre_header
    _
  $region3: #{gabor_conv2d.1} parent=0 // loop_header
    %s9 = sphi 0, %s13
    %p10 = scmp.ge.s32.totalorder %s9, 6
    %s16 = sphi 0, %s28
    %s17 = sphi 0, %s24
    %s18 = sphi 0, %s16
    %s19 = sphi 0, %s17
    %s20 = sphi 0, %s18
    %s21 = sphi 0, %s19
    %s29 = sphi 0, %s29
    %s31 = sphi 0, %s29
    %s32 = sphi 0, %s31
    %s46 = sphi 0, %s32
    %s54 = sphi 0, %s56
    %s57 = sphi 0, %s54
    %s58 = sphi 0, %s57
    %s74 = sphi 0, %s58
    %s84 = sphi 0, %s86
    %s87 = sphi 0, %s84
    %s88 = sphi 0, %s87
    %s104 = sphi 0, %s88
    %s112 = sphi 0, %s114
    %s115 = sphi 0, %s112
    %s116 = sphi 0, %s115
    %s132 = sphi 0, %s116
  $region4: #{gabor_conv2d.1} parent=0 // loop_header_branch
    %12 = sbr.rel (%p10) target = $region8
  $region5: #{gabor_conv2d.1} parent=0 // loop_body
    %s14 = ssub.s32 %s9, 1
    %s15 = ssub.s32 %s9, 2
    %s22 = sadd.s32 1, %s17
    %p23 = scmp.ge.s32.totalorder %s22, 2
    %s24 = scalar_select %p23, 0, %s22
    %s25 = sadd.s32 1, %s16
    %s26 = scalar_select %p23, %s25, %s16
    %p27 = scmp.ge.s32.totalorder %s26, 2
    %s28 = scalar_select %p27, 0, %s26
    %s30 = sadd.s32 %s29, 1
    %p33 = scmp.eq.s32.totalorder %s9, 3
    %p34 = scmp.ne.s32.totalorder %s29, %s31
    %p35 = scmp.eq.s32.totalorder %s9, 0
    %p36 = por %p34, %p35
    %p37 = scmp.ne.s32.totalorder %s29, %s31
    %p38 = scmp.eq.s32.totalorder %s14, 3
    %p39 = por %p37, %p38
    %p40 = scmp.ne.s32.totalorder %s31, %s32
    %p41 = scmp.eq.s32.totalorder %s14, 0
    %p42 = por %p40, %p41
    %p43 = scmp.ne.s32.totalorder %s31, %s32
    %p44 = scmp.eq.s32.totalorder %s15, 3
    %p45 = por %p43, %p44
    %p47 = scmp.ne.s32.totalorder %s32, %s46
    %p48 = scmp.eq.s32.totalorder %s15, 0
    %p49 = por %p47, %p48
    %s50 = ssub.s32 %s16, %s28
    %s51 = ssub.s32 %s17, %s24
    %s52 = sor.u32 %s50, %s51
    %p53 = scmp.eq.s32.totalorder %s52, 0
    %s55 = sadd.s32 %s54, 1
    %s56 = scalar_select %p53, %s54, %s55
    %p59 = pneg %p53
    %p60 = scmp.eq.s32.totalorder %s9, 3
    %p61 = por %p59, %p60
    %p62 = scmp.ne.s32.totalorder %s54, %s57
    %p63 = scmp.eq.s32.totalorder %s9, 0
    %p64 = por %p62, %p63
    %p65 = scmp.ne.s32.totalorder %s54, %s57
    %p66 = scmp.eq.s32.totalorder %s14, 3
    %p67 = por %p65, %p66
    %p68 = scmp.ne.s32.totalorder %s57, %s58
    %p69 = scmp.eq.s32.totalorder %s14, 0
    %p70 = por %p68, %p69
    %p71 = scmp.ne.s32.totalorder %s57, %s58
    %p72 = scmp.eq.s32.totalorder %s15, 3
    %p73 = por %p71, %p72
    %p75 = scmp.ne.s32.totalorder %s58, %s74
    %p76 = scmp.eq.s32.totalorder %s15, 0
    %p77 = por %p75, %p76
    %s78 = sadd.s32 %s17, 1
    %s79 = sadd.s32 %s24, 1
    %s80 = ssub.s32 %s16, %s28
    %s81 = ssub.s32 %s78, %s79
    %s82 = sor.u32 %s80, %s81
    %p83 = scmp.eq.s32.totalorder %s82, 0
    %s85 = sadd.s32 %s84, 1
    %s86 = scalar_select %p83, %s84, %s85
    %p89 = pneg %p83
    %p90 = scmp.eq.s32.totalorder %s9, 3
    %p91 = por %p89, %p90
    %p92 = scmp.ne.s32.totalorder %s84, %s87
    %p93 = scmp.eq.s32.totalorder %s9, 0
    %p94 = por %p92, %p93
    %p95 = scmp.ne.s32.totalorder %s84, %s87
    %p96 = scmp.eq.s32.totalorder %s14, 3
    %p97 = por %p95, %p96
    %p98 = scmp.ne.s32.totalorder %s87, %s88
    %p99 = scmp.eq.s32.totalorder %s14, 0
    %p100 = por %p98, %p99
    %p101 = scmp.ne.s32.totalorder %s87, %s88
    %p102 = scmp.eq.s32.totalorder %s15, 3
    %p103 = por %p101, %p102
    %p105 = scmp.ne.s32.totalorder %s88, %s104
    %p106 = scmp.eq.s32.totalorder %s15, 0
    %p107 = por %p105, %p106
    %s108 = ssub.s32 %s16, %s28
    %s109 = ssub.s32 %s17, %s24
    %s110 = sor.u32 %s108, %s109
    %p111 = scmp.eq.s32.totalorder %s110, 0
    %s113 = sadd.s32 %s112, 1
    %s114 = scalar_select %p111, %s112, %s113
    %p117 = pneg %p111
    %p118 = scmp.eq.s32.totalorder %s9, 3
    %p119 = por %p117, %p118
    %p120 = scmp.ne.s32.totalorder %s112, %s115
    %p121 = scmp.eq.s32.totalorder %s9, 0
    %p122 = por %p120, %p121
    %p123 = scmp.ne.s32.totalorder %s112, %s115
    %p124 = scmp.eq.s32.totalorder %s14, 3
    %p125 = por %p123, %p124
    %p126 = scmp.ne.s32.totalorder %s115, %s116
    %p127 = scmp.eq.s32.totalorder %s14, 0
    %p128 = por %p126, %p127
    %p129 = scmp.ne.s32.totalorder %s115, %s116
    %p130 = scmp.eq.s32.totalorder %s15, 3
    %p131 = por %p129, %p130
    %p133 = scmp.ne.s32.totalorder %s116, %s132
    %p134 = scmp.eq.s32.totalorder %s15, 0
    %p135 = por %p133, %p134
    %p136 = scmp.le.s32.totalorder 1, %s9
    %p137 = scmp.lt.s32.totalorder %s9, 5
    %p138 = pnand %p136, %p137
    %p139 = pneg %p138
    // Predicated region
    $region9: #{gabor_conv2d.1} parent=5 // pred_check
      _
    $region10: #{gabor_conv2d.1} parent=5 // pred_check_branch
      %141 = sbr.rel (%p138) target = $region12
    $region11: #{gabor_conv2d.1} parent=5 // pred_region
      %s142 = ssub.s32 %s9, 1
      // Predicated region
      $region13: #{gabor_conv2d.1} parent=11 // pred_check
        %p143 = pneg %p42
      $region14: #{gabor_conv2d.1} parent=11 // pred_check_branch
        %145 = sbr.rel (%p143) target = $region16
      $region15: #{gabor_conv2d.1} parent=11 // pred_region
        _
      $region16: #{gabor_conv2d.1} parent=11 // pred_fallthru
        _
    $region12: #{gabor_conv2d.1} parent=5 // pred_fallthru
      _
    %p146 = scmp.lt.s32.totalorder %s9, 4
    // Predicated region
    $region17: #{gabor_conv2d.1} parent=5 // pred_check
      %p147 = pneg %p146
    $region18: #{gabor_conv2d.1} parent=5 // pred_check_branch
      %149 = sbr.rel (%p147) target = $region20
    $region19: #{gabor_conv2d.1} parent=5 // pred_region
      // Predicated region
      $region21: #{gabor_conv2d.1} parent=19 // pred_check
        %p150 = pneg %p64
      $region22: #{gabor_conv2d.1} parent=19 // pred_check_branch
        %152 = sbr.rel (%p150) target = $region24
      $region23: #{gabor_conv2d.1} parent=19 // pred_region
        %s153 = smul.u32 2, %s17
        %p154 = scmp.lt.s32.totalorder %s16, 1
        %s155 = scalar_select %p154, %s16, 1
        %p156 = scmp.lt.s32.totalorder %s153, 5
        %s157 = scalar_select %p156, %s153, 5
        %s158 = smul.addr %s155, 6
        %s159 = sadd.s32 %s157, %s158
        %s160 = smul.addr %s159, 4
        %s161 = scalar_lea.vmem %s1, %s160
        %s162 = smul.u32 2, %s17
      $region24: #{gabor_conv2d.1} parent=19 // pred_fallthru
        _
      // Predicated region
      $region25: #{gabor_conv2d.1} parent=19 // pred_check
        %p163 = pneg %p94
      $region26: #{gabor_conv2d.1} parent=19 // pred_check_branch
        %165 = sbr.rel (%p163) target = $region28
      $region27: #{gabor_conv2d.1} parent=19 // pred_region
        %s166 = sadd.s32 %s17, 1
        %s167 = smul.u32 2, %s166
        %p168 = scmp.lt.s32.totalorder %s16, 1
        %s169 = scalar_select %p168, %s16, 1
        %p170 = scmp.lt.s32.totalorder %s167, 5
        %s171 = scalar_select %p170, %s167, 5
        %s172 = smul.addr %s169, 6
        %s173 = sadd.s32 %s171, %s172
        %s174 = smul.addr %s173, 4
        %s175 = scalar_lea.vmem %s2, %s174
        %s176 = sadd.s32 %s17, 1
        %s177 = smul.u32 2, %s176
      $region28: #{gabor_conv2d.1} parent=19 // pred_fallthru
        _
    $region20: #{gabor_conv2d.1} parent=5 // pred_fallthru
      _
    %p178 = scmp.le.s32.totalorder 1, %s9
    %p179 = scmp.lt.s32.totalorder %s9, 5
    %p180 = pnand %p178, %p179
    %p181 = pneg %p180
    // Predicated region
    $region29: #{gabor_conv2d.1} parent=5 // pred_check
      _
    $region30: #{gabor_conv2d.1} parent=5 // pred_check_branch
      %183 = sbr.rel (%p180) target = $region32
    $region31: #{gabor_conv2d.1} parent=5 // pred_region
      %s184 = ssub.s32 %s9, 1
      %p185 = pneg %p42
      %p186 = pneg %p39
      %s187 = smul.u32 2, %s19
      %p188 = scmp.lt.s32.totalorder %s18, 1
      %s189 = scalar_select %p188, %s18, 1
      %p190 = scmp.lt.s32.totalorder %s187, 5
      %s191 = scalar_select %p190, %s187, 5
      %s192 = smul.addr %s189, 6
      %s193 = sadd.s32 %s191, %s192
      %s194 = smul.addr %s193, 4
      %s195 = scalar_lea.vmem %s1, %s194
      %p196 = pneg %p70
      %p197 = pneg %p67
      %s198 = sadd.s32 %s19, 1
      %s199 = smul.u32 2, %s198
      %p200 = scmp.lt.s32.totalorder %s18, 1
      %s201 = scalar_select %p200, %s18, 1
      %p202 = scmp.lt.s32.totalorder %s199, 5
      %s203 = scalar_select %p202, %s199, 5
      %s204 = smul.addr %s201, 6
      %s205 = sadd.s32 %s203, %s204
      %s206 = smul.addr %s205, 4
      %s207 = scalar_lea.vmem %s2, %s206
      %p208 = pneg %p100
      %p209 = pneg %p97
      %p210 = pneg %p128
      %p211 = pneg %p125
      %s212 = smul.u32 2, %s19
      %p213 = scmp.lt.s32.totalorder %s18, 1
      %s214 = scalar_select %p213, %s18, 1
      %p215 = scmp.lt.s32.totalorder %s212, 3
      %s216 = scalar_select %p215, %s212, 3
      %s217 = smul.addr %s214, 4
      %s218 = sadd.s32 %s216, %s217
      %s219 = smul.addr %s218, 8
      %s220 = scalar_lea.vmem %s3, %s219
      %s221 = smul.u32 2, %s19
      %p222 = scmp.lt.s32.totalorder %s18, 1
      %s223 = scalar_select %p222, %s18, 1
      %p224 = scmp.lt.s32.totalorder %s221, 5
      %s225 = scalar_select %p224, %s221, 5
      %s226 = smul.addr %s223, 6
      %s227 = sadd.s32 %s225, %s226
      %s228 = smul.addr %s227, 4
      %s229 = scalar_lea.vmem %s1, %s228
      %s230 = smul.u32 2, %s19
      %s231 = sadd.s32 %s19, 1
      %s232 = smul.u32 2, %s231
      %p233 = scmp.lt.s32.totalorder %s18, 1
      %s234 = scalar_select %p233, %s18, 1
      %p235 = scmp.lt.s32.totalorder %s232, 5
      %s236 = scalar_select %p235, %s232, 5
      %s237 = smul.addr %s234, 6
      %s238 = sadd.s32 %s236, %s237
      %s239 = smul.addr %s238, 4
      %s240 = scalar_lea.vmem %s2, %s239
      %s241 = sadd.s32 %s19, 1
      %s242 = smul.u32 2, %s241
      %s243 = smul.u32 2, %s19
      %p244 = scmp.lt.s32.totalorder %s18, 1
      %s245 = scalar_select %p244, %s18, 1
      %p246 = scmp.lt.s32.totalorder %s243, 3
      %s247 = scalar_select %p246, %s243, 3
      %s248 = smul.addr %s245, 4
      %s249 = sadd.s32 %s247, %s248
      %s250 = smul.addr %s249, 8
      %s251 = scalar_lea.vmem %s3, %s250
      %s252 = smul.u32 2, %s19
      %v253 = vld [vmem:[%s229] sm:$0xff]
      %254 = vst [vmem:[#allocation2] sm:$0xff] %v253
      %v255 = vld [vmem:[%s240] sm:$0xf]
      %256 = vst [vmem:[#allocation2 + $0x8] sm:$0xf] %v255
      %v257 = vld [vmem:[#allocation2] sm:$0xff]
      %v258 = vld [vmem:[%s0] sm:$0xff]
      %v259 = vld [vmem:[#allocation2] sm:$0xff]
      %v260 = vld [vmem:[#allocation2 + $0x8] sm:$0xf]
      %s261 = scalar_lea.vmem %s0, 8
      %v262 = vld [vmem:[%s261] sm:$0xff]
      %265 = vst [vmem:[#allocation1] ss:$2 sm:$0xff] %v259
      %s266 = scalar_lea.vmem [#allocation1], 16
      %267 = vst [vmem:[%s266] ss:$2 sm:$0xff] %v260
      %v268 = vld.sshfl [vmem:[#allocation1] sm:$0xff pattern:$0x75316420]
      %v269 = vld.sshfl [vmem:[#allocation1 + $0x8] sm:$0xff pattern:$0x75316420]
      %v270 = vld.sshfl [vmem:[#allocation1 + $0x10] sm:$0xff pattern:$0x75316420]
      %271 = vrot.lane.b32.xlu0 %v268, 127
      %v272 = vpop.permute.xlu0 %271
      %273 = vrot.lane.b32.xlu0 %v269, 127
      %v274 = vpop.permute.xlu0 %273
      %275 = vrot.lane.b32.xlu0 %v270, 127
      %v276 = vpop.permute.xlu0 %275
      %vm277 = vcmask 1039360
      %v278 = vsel %vm277, %v272, %v274
      %v279 = vsel %vm277, %v274, %v276
      %vm280 = vcmask 31744
      %v282 = vsel %vm280, %v262, 0
      %vm284 = vcmask 1043456
      %v285 = vsel %vm284, %v278, 0
      %v287 = vsel %vm284, %v279, 0
      %289 = vmatpush.msra.mxu0 0.0
      %290 = vmatpush.msra.mxu0 0.0
      %291 = vmatpush.msra.mxu0 0.0
      %292 = vmatpush.msra.mxu0 0.0
      %293 = vmatpush.msra.mxu0 0.0
      %294 = vmatpush.msra.mxu0 0.0
      %295 = vmatpush.msra.mxu0 0.0
      %296 = vmatpush.msra.mxu0 0.0
      %297 = vmatpush.msra.mxu0 0.0
      %298 = vmatpush.msra.mxu0 0.0
      %299 = vmatpush.msra.mxu0 0.0
      %300 = vmatpush.msra.mxu0 0.0
      %301 = vmatpush.msra.mxu0 0.0
      %302 = vmatpush.msra.mxu0 0.0
      %303 = vmatpush.msra.mxu0 0.0
      %304 = vmatpush.msra.mxu0 %v285
      %305 = vmatmul.f32.gmra.mxu0 %v282
      %v306 = vpop.f32.mrf.mxu0
      %v307 = vadd.f32 0.0, %v306
      %308 = vdwg.mxu0
      %309 = vmatpush.msra.mxu0 0.0
      %310 = vmatpush.msra.mxu0 0.0
      %311 = vmatpush.msra.mxu0 0.0
      %312 = vmatpush.msra.mxu0 0.0
      %313 = vmatpush.msra.mxu0 0.0
      %314 = vmatpush.msra.mxu0 0.0
      %315 = vmatpush.msra.mxu0 0.0
      %316 = vmatpush.msra.mxu0 0.0
      %317 = vmatpush.msra.mxu0 0.0
      %318 = vmatpush.msra.mxu0 0.0
      %319 = vmatpush.msra.mxu0 0.0
      %320 = vmatpush.msra.mxu0 0.0
      %321 = vmatpush.msra.mxu0 0.0
      %322 = vmatpush.msra.mxu0 0.0
      %323 = vmatpush.msra.mxu0 0.0
      %324 = vmatpush.msra.mxu0 %v287
      %325 = vmatmul.f32.gmra.mxu0 %v282
      %v326 = vpop.f32.mrf.mxu0
      %v327 = vadd.f32 0.0, %v326
      %328 = vdwg.mxu0
      %330 = vst [vmem:[#allocation1] ss:$2 sm:$0xff] %v257
      %v331 = vld.sshfl [vmem:[#allocation1] sm:$0xff pattern:$0x75316420]
      %v332 = vld.sshfl [vmem:[#allocation1 + $0x8] sm:$0xff pattern:$0x75316420]
      %v334 = vsel %vm280, %v258, 0
      %v336 = vsel %vm284, %v331, 0
      %v338 = vsel %vm284, %v332, 0
      %340 = vmatpush.msra.mxu0 0.0
      %341 = vmatpush.msra.mxu0 0.0
      %342 = vmatpush.msra.mxu0 0.0
      %343 = vmatpush.msra.mxu0 0.0
      %344 = vmatpush.msra.mxu0 0.0
      %345 = vmatpush.msra.mxu0 0.0
      %346 = vmatpush.msra.mxu0 0.0
      %347 = vmatpush.msra.mxu0 0.0
      %348 = vmatpush.msra.mxu0 0.0
      %349 = vmatpush.msra.mxu0 0.0
      %350 = vmatpush.msra.mxu0 0.0
      %351 = vmatpush.msra.mxu0 0.0
      %352 = vmatpush.msra.mxu0 0.0
      %353 = vmatpush.msra.mxu0 0.0
      %354 = vmatpush.msra.mxu0 0.0
      %355 = vmatpush.msra.mxu0 %v336
      %356 = vmatmul.f32.gmra.mxu0 %v334
      %v357 = vpop.f32.mrf.mxu0
      %v358 = vadd.f32 %v307, %v357
      %359 = vdwg.mxu0
      %360 = vmatpush.msra.mxu0 0.0
      %361 = vmatpush.msra.mxu0 0.0
      %362 = vmatpush.msra.mxu0 0.0
      %363 = vmatpush.msra.mxu0 0.0
      %364 = vmatpush.msra.mxu0 0.0
      %365 = vmatpush.msra.mxu0 0.0
      %366 = vmatpush.msra.mxu0 0.0
      %367 = vmatpush.msra.mxu0 0.0
      %368 = vmatpush.msra.mxu0 0.0
      %369 = vmatpush.msra.mxu0 0.0
      %370 = vmatpush.msra.mxu0 0.0
      %371 = vmatpush.msra.mxu0 0.0
      %372 = vmatpush.msra.mxu0 0.0
      %373 = vmatpush.msra.mxu0 0.0
      %374 = vmatpush.msra.mxu0 0.0
      %375 = vmatpush.msra.mxu0 %v338
      %376 = vmatmul.f32.gmra.mxu0 %v334
      %v377 = vpop.f32.mrf.mxu0
      %v378 = vadd.f32 %v327, %v377
      %379 = vdwg.mxu0
      %v380 = vld [vmem:[#allocation2] sm:$0xff]
      %v381 = vld [vmem:[#allocation2 + $0x8] sm:$0xf]
      %s382 = scalar_lea.vmem %s0, 16
      %v383 = vld [vmem:[%s382] sm:$0xff]
      %386 = vst [vmem:[#allocation1] ss:$2 sm:$0xff] %v380
      %s387 = scalar_lea.vmem [#allocation1], 16
      %388 = vst [vmem:[%s387] ss:$2 sm:$0xff] %v381
      %v389 = vld.sshfl [vmem:[#allocation1] sm:$0xff pattern:$0x75316420]
      %v390 = vld.sshfl [vmem:[#allocation1 + $0x8] sm:$0xff pattern:$0x75316420]
      %v391 = vld.sshfl [vmem:[#allocation1 + $0x10] sm:$0xff pattern:$0x75316420]
      %392 = vrot.lane.b32.xlu0 %v389, 126
      %v393 = vpop.permute.xlu0 %392
      %394 = vrot.lane.b32.xlu0 %v390, 126
      %v395 = vpop.permute.xlu0 %394
      %396 = vrot.lane.b32.xlu0 %v391, 126
      %v397 = vpop.permute.xlu0 %396
      %vm398 = vcmask 1031168
      %v399 = vsel %vm398, %v393, %v395
      %v400 = vsel %vm398, %v395, %v397
      %v402 = vsel %vm280, %v383, 0
      %v404 = vsel %vm284, %v399, 0
      %v406 = vsel %vm284, %v400, 0
      %408 = vmatpush.msra.mxu0 0.0
      %409 = vmatpush.msra.mxu0 0.0
      %410 = vmatpush.msra.mxu0 0.0
      %411 = vmatpush.msra.mxu0 0.0
      %412 = vmatpush.msra.mxu0 0.0
      %413 = vmatpush.msra.mxu0 0.0
      %414 = vmatpush.msra.mxu0 0.0
      %415 = vmatpush.msra.mxu0 0.0
      %416 = vmatpush.msra.mxu0 0.0
      %417 = vmatpush.msra.mxu0 0.0
      %418 = vmatpush.msra.mxu0 0.0
      %419 = vmatpush.msra.mxu0 0.0
      %420 = vmatpush.msra.mxu0 0.0
      %421 = vmatpush.msra.mxu0 0.0
      %422 = vmatpush.msra.mxu0 0.0
      %423 = vmatpush.msra.mxu0 %v404
      %424 = vmatmul.f32.gmra.mxu0 %v402
      %v425 = vpop.f32.mrf.mxu0
      %v426 = vadd.f32 0.0, %v425
      %427 = vdwg.mxu0
      %428 = vmatpush.msra.mxu0 0.0
      %429 = vmatpush.msra.mxu0 0.0
      %430 = vmatpush.msra.mxu0 0.0
      %431 = vmatpush.msra.mxu0 0.0
      %432 = vmatpush.msra.mxu0 0.0
      %433 = vmatpush.msra.mxu0 0.0
      %434 = vmatpush.msra.mxu0 0.0
      %435 = vmatpush.msra.mxu0 0.0
      %436 = vmatpush.msra.mxu0 0.0
      %437 = vmatpush.msra.mxu0 0.0
      %438 = vmatpush.msra.mxu0 0.0
      %439 = vmatpush.msra.mxu0 0.0
      %440 = vmatpush.msra.mxu0 0.0
      %441 = vmatpush.msra.mxu0 0.0
      %442 = vmatpush.msra.mxu0 0.0
      %443 = vmatpush.msra.mxu0 %v406
      %444 = vmatmul.f32.gmra.mxu0 %v402
      %v445 = vpop.f32.mrf.mxu0
      %v446 = vadd.f32 0.0, %v445
      %447 = vdwg.mxu0
      %v448 = vadd.f32 %v358, %v426
      %v449 = vadd.f32 %v378, %v446
      %v450 = vld [vmem:[#allocation2] sm:$0xff]
      %v451 = vld [vmem:[#allocation2 + $0x8] sm:$0xf]
      %s452 = scalar_lea.vmem %s0, 24
      %v453 = vld [vmem:[%s452] sm:$0xff]
      %456 = vst [vmem:[#allocation1] ss:$2 sm:$0xff] %v450
      %s457 = scalar_lea.vmem [#allocation1], 16
      %458 = vst [vmem:[%s457] ss:$2 sm:$0xff] %v451
      %v459 = vld.sshfl [vmem:[#allocation1] sm:$0xff pattern:$0x75316420]
      %v460 = vld.sshfl [vmem:[#allocation1 + $0x8] sm:$0xff pattern:$0x75316420]
      %v461 = vld.sshfl [vmem:[#allocation1 + $0x10] sm:$0xff pattern:$0x75316420]
      %462 = vrot.lane.b32.xlu0 %v459, 110
      %v463 = vpop.permute.xlu0 %462
      %464 = vrot.lane.b32.xlu0 %v460, 110
      %v465 = vpop.permute.xlu0 %464
      %466 = vrot.lane.b32.xlu0 %v461, 110
      %v467 = vpop.permute.xlu0 %466
      %vm468 = vcmask 900096
      %v469 = vsel %vm468, %v463, %v465
      %v470 = vsel %vm468, %v465, %v467
      %v472 = vsel %vm280, %v453, 0
      %v474 = vsel %vm284, %v469, 0
      %v476 = vsel %vm284, %v470, 0
      %478 = vmatpush.msra.mxu0 0.0
      %479 = vmatpush.msra.mxu0 0.0
      %480 = vmatpush.msra.mxu0 0.0
      %481 = vmatpush.msra.mxu0 0.0
      %482 = vmatpush.msra.mxu0 0.0
      %483 = vmatpush.msra.mxu0 0.0
      %484 = vmatpush.msra.mxu0 0.0
      %485 = vmatpush.msra.mxu0 0.0
      %486 = vmatpush.msra.mxu0 0.0
      %487 = vmatpush.msra.mxu0 0.0
      %488 = vmatpush.msra.mxu0 0.0
      %489 = vmatpush.msra.mxu0 0.0
      %490 = vmatpush.msra.mxu0 0.0
      %491 = vmatpush.msra.mxu0 0.0
      %492 = vmatpush.msra.mxu0 0.0
      %493 = vmatpush.msra.mxu0 %v474
      %494 = vmatmul.f32.gmra.mxu0 %v472
      %v495 = vpop.f32.mrf.mxu0
      %v496 = vadd.f32 0.0, %v495
      %497 = vdwg.mxu0
      %498 = vmatpush.msra.mxu0 0.0
      %499 = vmatpush.msra.mxu0 0.0
      %500 = vmatpush.msra.mxu0 0.0
      %501 = vmatpush.msra.mxu0 0.0
      %502 = vmatpush.msra.mxu0 0.0
      %503 = vmatpush.msra.mxu0 0.0
      %504 = vmatpush.msra.mxu0 0.0
      %505 = vmatpush.msra.mxu0 0.0
      %506 = vmatpush.msra.mxu0 0.0
      %507 = vmatpush.msra.mxu0 0.0
      %508 = vmatpush.msra.mxu0 0.0
      %509 = vmatpush.msra.mxu0 0.0
      %510 = vmatpush.msra.mxu0 0.0
      %511 = vmatpush.msra.mxu0 0.0
      %512 = vmatpush.msra.mxu0 0.0
      %513 = vmatpush.msra.mxu0 %v476
      %514 = vmatmul.f32.gmra.mxu0 %v472
      %v515 = vpop.f32.mrf.mxu0
      %v516 = vadd.f32 0.0, %v515
      %517 = vdwg.mxu0
      %v518 = vadd.f32 %v448, %v496
      %v519 = vadd.f32 %v449, %v516
      %v520 = vld [vmem:[#allocation2] sm:$0xff]
      %v521 = vld [vmem:[#allocation2 + $0x8] sm:$0xf]
      %s522 = scalar_lea.vmem %s0, 32
      %v523 = vld [vmem:[%s522] sm:$0xff]
      %526 = vst [vmem:[#allocation1] ss:$2 sm:$0xff] %v520
      %s527 = scalar_lea.vmem [#allocation1], 16
      %528 = vst [vmem:[%s527] ss:$2 sm:$0xff] %v521
      %v529 = vld.sshfl [vmem:[#allocation1] sm:$0xff pattern:$0x75316420]
      %v530 = vld.sshfl [vmem:[#allocation1 + $0x8] sm:$0xff pattern:$0x75316420]
      %v531 = vld.sshfl [vmem:[#allocation1 + $0x10] sm:$0xff pattern:$0x75316420]
      %532 = vrot.lane.b32.xlu0 %v529, 109
      %v533 = vpop.permute.xlu0 %532
      %534 = vrot.lane.b32.xlu0 %v530, 109
      %v535 = vpop.permute.xlu0 %534
      %536 = vrot.lane.b32.xlu0 %v531, 109
      %v537 = vpop.permute.xlu0 %536
      %vm538 = vcmask 891904
      %v539 = vsel %vm538, %v533, %v535
      %v540 = vsel %vm538, %v535, %v537
      %v542 = vsel %vm280, %v523, 0
      %v544 = vsel %vm284, %v539, 0
      %v546 = vsel %vm284, %v540, 0
      %548 = vmatpush.msra.mxu0 0.0
      %549 = vmatpush.msra.mxu0 0.0
      %550 = vmatpush.msra.mxu0 0.0
      %551 = vmatpush.msra.mxu0 0.0
      %552 = vmatpush.msra.mxu0 0.0
      %553 = vmatpush.msra.mxu0 0.0
      %554 = vmatpush.msra.mxu0 0.0
      %555 = vmatpush.msra.mxu0 0.0
      %556 = vmatpush.msra.mxu0 0.0
      %557 = vmatpush.msra.mxu0 0.0
      %558 = vmatpush.msra.mxu0 0.0
      %559 = vmatpush.msra.mxu0 0.0
      %560 = vmatpush.msra.mxu0 0.0
      %561 = vmatpush.msra.mxu0 0.0
      %562 = vmatpush.msra.mxu0 0.0
      %563 = vmatpush.msra.mxu0 %v544
      %564 = vmatmul.f32.gmra.mxu0 %v542
      %v565 = vpop.f32.mrf.mxu0
      %v566 = vadd.f32 0.0, %v565
      %567 = vdwg.mxu0
      %568 = vmatpush.msra.mxu0 0.0
      %569 = vmatpush.msra.mxu0 0.0
      %570 = vmatpush.msra.mxu0 0.0
      %571 = vmatpush.msra.mxu0 0.0
      %572 = vmatpush.msra.mxu0 0.0
      %573 = vmatpush.msra.mxu0 0.0
      %574 = vmatpush.msra.mxu0 0.0
      %575 = vmatpush.msra.mxu0 0.0
      %576 = vmatpush.msra.mxu0 0.0
      %577 = vmatpush.msra.mxu0 0.0
      %578 = vmatpush.msra.mxu0 0.0
      %579 = vmatpush.msra.mxu0 0.0
      %580 = vmatpush.msra.mxu0 0.0
      %581 = vmatpush.msra.mxu0 0.0
      %582 = vmatpush.msra.mxu0 0.0
      %583 = vmatpush.msra.mxu0 %v546
      %584 = vmatmul.f32.gmra.mxu0 %v542
      %v585 = vpop.f32.mrf.mxu0
      %v586 = vadd.f32 0.0, %v585
      %587 = vdwg.mxu0
      %v588 = vadd.f32 %v518, %v566
      %v589 = vadd.f32 %v519, %v586
      %v590 = vld [vmem:[#allocation2] sm:$0xff]
      %v591 = vld [vmem:[#allocation2 + $0x8] sm:$0xf]
      %s592 = scalar_lea.vmem %s0, 40
      %v593 = vld [vmem:[%s592] sm:$0xff]
      %596 = vst [vmem:[#allocation1] ss:$2 sm:$0xff] %v590
      %s597 = scalar_lea.vmem [#allocation1], 16
      %598 = vst [vmem:[%s597] ss:$2 sm:$0xff] %v591
      %v599 = vld.sshfl [vmem:[#allocation1] sm:$0xff pattern:$0x75316420]
      %v600 = vld.sshfl [vmem:[#allocation1 + $0x8] sm:$0xff pattern:$0x75316420]
      %v601 = vld.sshfl [vmem:[#allocation1 + $0x10] sm:$0xff pattern:$0x75316420]
      %602 = vrot.lane.b32.xlu0 %v599, 108
      %v603 = vpop.permute.xlu0 %602
      %604 = vrot.lane.b32.xlu0 %v600, 108
      %v605 = vpop.permute.xlu0 %604
      %606 = vrot.lane.b32.xlu0 %v601, 108
      %v607 = vpop.permute.xlu0 %606
      %vm608 = vcmask 883712
      %v609 = vsel %vm608, %v603, %v605
      %v610 = vsel %vm608, %v605, %v607
      %v612 = vsel %vm280, %v593, 0
      %v614 = vsel %vm284, %v609, 0
      %v616 = vsel %vm284, %v610, 0
      %618 = vmatpush.msra.mxu0 0.0
      %619 = vmatpush.msra.mxu0 0.0
      %620 = vmatpush.msra.mxu0 0.0
      %621 = vmatpush.msra.mxu0 0.0
      %622 = vmatpush.msra.mxu0 0.0
      %623 = vmatpush.msra.mxu0 0.0
      %624 = vmatpush.msra.mxu0 0.0
      %625 = vmatpush.msra.mxu0 0.0
      %626 = vmatpush.msra.mxu0 0.0
      %627 = vmatpush.msra.mxu0 0.0
      %628 = vmatpush.msra.mxu0 0.0
      %629 = vmatpush.msra.mxu0 0.0
      %630 = vmatpush.msra.mxu0 0.0
      %631 = vmatpush.msra.mxu0 0.0
      %632 = vmatpush.msra.mxu0 0.0
      %633 = vmatpush.msra.mxu0 %v614
      %634 = vmatmul.f32.gmra.mxu0 %v612
      %v635 = vpop.f32.mrf.mxu0
      %v636 = vadd.f32 0.0, %v635
      %637 = vdwg.mxu0
      %638 = vmatpush.msra.mxu0 0.0
      %639 = vmatpush.msra.mxu0 0.0
      %640 = vmatpush.msra.mxu0 0.0
      %641 = vmatpush.msra.mxu0 0.0
      %642 = vmatpush.msra.mxu0 0.0
      %643 = vmatpush.msra.mxu0 0.0
      %644 = vmatpush.msra.mxu0 0.0
      %645 = vmatpush.msra.mxu0 0.0
      %646 = vmatpush.msra.mxu0 0.0
      %647 = vmatpush.msra.mxu0 0.0
      %648 = vmatpush.msra.mxu0 0.0
      %649 = vmatpush.msra.mxu0 0.0
      %650 = vmatpush.msra.mxu0 0.0
      %651 = vmatpush.msra.mxu0 0.0
      %652 = vmatpush.msra.mxu0 0.0
      %653 = vmatpush.msra.mxu0 %v616
      %654 = vmatmul.f32.gmra.mxu0 %v612
      %v655 = vpop.f32.mrf.mxu0
      %v656 = vadd.f32 0.0, %v655
      %657 = vdwg.mxu0
      %v658 = vadd.f32 %v588, %v636
      %v659 = vadd.f32 %v589, %v656
      %v660 = vld [vmem:[#allocation2] sm:$0xff]
      %v661 = vld [vmem:[#allocation2 + $0x8] sm:$0xf]
      %s662 = scalar_lea.vmem %s0, 48
      %v663 = vld [vmem:[%s662] sm:$0xff]
      %666 = vst [vmem:[#allocation1] ss:$2 sm:$0xff] %v660
      %s667 = scalar_lea.vmem [#allocation1], 16
      %668 = vst [vmem:[%s667] ss:$2 sm:$0xff] %v661
      %v669 = vld.sshfl [vmem:[#allocation1] sm:$0xff pattern:$0x75316420]
      %v670 = vld.sshfl [vmem:[#allocation1 + $0x8] sm:$0xff pattern:$0x75316420]
      %v671 = vld.sshfl [vmem:[#allocation1 + $0x10] sm:$0xff pattern:$0x75316420]
      %672 = vrot.lane.b32.xlu0 %v669, 92
      %v673 = vpop.permute.xlu0 %672
      %674 = vrot.lane.b32.xlu0 %v670, 92
      %v675 = vpop.permute.xlu0 %674
      %676 = vrot.lane.b32.xlu0 %v671, 92
      %v677 = vpop.permute.xlu0 %676
      %vm678 = vcmask 752640
      %v679 = vsel %vm678, %v673, %v675
      %v680 = vsel %vm678, %v675, %v677
      %v682 = vsel %vm280, %v663, 0
      %v684 = vsel %vm284, %v679, 0
      %v686 = vsel %vm284, %v680, 0
      %688 = vmatpush.msra.mxu0 0.0
      %689 = vmatpush.msra.mxu0 0.0
      %690 = vmatpush.msra.mxu0 0.0
      %691 = vmatpush.msra.mxu0 0.0
      %692 = vmatpush.msra.mxu0 0.0
      %693 = vmatpush.msra.mxu0 0.0
      %694 = vmatpush.msra.mxu0 0.0
      %695 = vmatpush.msra.mxu0 0.0
      %696 = vmatpush.msra.mxu0 0.0
      %697 = vmatpush.msra.mxu0 0.0
      %698 = vmatpush.msra.mxu0 0.0
      %699 = vmatpush.msra.mxu0 0.0
      %700 = vmatpush.msra.mxu0 0.0
      %701 = vmatpush.msra.mxu0 0.0
      %702 = vmatpush.msra.mxu0 0.0
      %703 = vmatpush.msra.mxu0 %v684
      %704 = vmatmul.f32.gmra.mxu0 %v682
      %v705 = vpop.f32.mrf.mxu0
      %v706 = vadd.f32 0.0, %v705
      %707 = vdwg.mxu0
      %708 = vmatpush.msra.mxu0 0.0
      %709 = vmatpush.msra.mxu0 0.0
      %710 = vmatpush.msra.mxu0 0.0
      %711 = vmatpush.msra.mxu0 0.0
      %712 = vmatpush.msra.mxu0 0.0
      %713 = vmatpush.msra.mxu0 0.0
      %714 = vmatpush.msra.mxu0 0.0
      %715 = vmatpush.msra.mxu0 0.0
      %716 = vmatpush.msra.mxu0 0.0
      %717 = vmatpush.msra.mxu0 0.0
      %718 = vmatpush.msra.mxu0 0.0
      %719 = vmatpush.msra.mxu0 0.0
      %720 = vmatpush.msra.mxu0 0.0
      %721 = vmatpush.msra.mxu0 0.0
      %722 = vmatpush.msra.mxu0 0.0
      %723 = vmatpush.msra.mxu0 %v686
      %724 = vmatmul.f32.gmra.mxu0 %v682
      %v725 = vpop.f32.mrf.mxu0
      %v726 = vadd.f32 0.0, %v725
      %727 = vdwg.mxu0
      %v728 = vadd.f32 %v658, %v706
      %v729 = vadd.f32 %v659, %v726
      %v730 = vld [vmem:[#allocation2] sm:$0xff]
      %v731 = vld [vmem:[#allocation2 + $0x8] sm:$0xf]
      %s732 = scalar_lea.vmem %s0, 56
      %v733 = vld [vmem:[%s732] sm:$0xff]
      %736 = vst [vmem:[#allocation1] ss:$2 sm:$0xff] %v730
      %s737 = scalar_lea.vmem [#allocation1], 16
      %738 = vst [vmem:[%s737] ss:$2 sm:$0xff] %v731
      %v739 = vld.sshfl [vmem:[#allocation1] sm:$0xff pattern:$0x75316420]
      %v740 = vld.sshfl [vmem:[#allocation1 + $0x8] sm:$0xff pattern:$0x75316420]
      %v741 = vld.sshfl [vmem:[#allocation1 + $0x10] sm:$0xff pattern:$0x75316420]
      %742 = vrot.lane.b32.xlu0 %v739, 91
      %v743 = vpop.permute.xlu0 %742
      %744 = vrot.lane.b32.xlu0 %v740, 91
      %v745 = vpop.permute.xlu0 %744
      %746 = vrot.lane.b32.xlu0 %v741, 91
      %v747 = vpop.permute.xlu0 %746
      %vm748 = vcmask 744448
      %v749 = vsel %vm748, %v743, %v745
      %v750 = vsel %vm748, %v745, %v747
      %v752 = vsel %vm280, %v733, 0
      %v754 = vsel %vm284, %v749, 0
      %v756 = vsel %vm284, %v750, 0
      %758 = vmatpush.msra.mxu0 0.0
      %759 = vmatpush.msra.mxu0 0.0
      %760 = vmatpush.msra.mxu0 0.0
      %761 = vmatpush.msra.mxu0 0.0
      %762 = vmatpush.msra.mxu0 0.0
      %763 = vmatpush.msra.mxu0 0.0
      %764 = vmatpush.msra.mxu0 0.0
      %765 = vmatpush.msra.mxu0 0.0
      %766 = vmatpush.msra.mxu0 0.0
      %767 = vmatpush.msra.mxu0 0.0
      %768 = vmatpush.msra.mxu0 0.0
      %769 = vmatpush.msra.mxu0 0.0
      %770 = vmatpush.msra.mxu0 0.0
      %771 = vmatpush.msra.mxu0 0.0
      %772 = vmatpush.msra.mxu0 0.0
      %773 = vmatpush.msra.mxu0 %v754
      %774 = vmatmul.f32.gmra.mxu0 %v752
      %v775 = vpop.f32.mrf.mxu0
      %v776 = vadd.f32 0.0, %v775
      %777 = vdwg.mxu0
      %778 = vmatpush.msra.mxu0 0.0
      %779 = vmatpush.msra.mxu0 0.0
      %780 = vmatpush.msra.mxu0 0.0
      %781 = vmatpush.msra.mxu0 0.0
      %782 = vmatpush.msra.mxu0 0.0
      %783 = vmatpush.msra.mxu0 0.0
      %784 = vmatpush.msra.mxu0 0.0
      %785 = vmatpush.msra.mxu0 0.0
      %786 = vmatpush.msra.mxu0 0.0
      %787 = vmatpush.msra.mxu0 0.0
      %788 = vmatpush.msra.mxu0 0.0
      %789 = vmatpush.msra.mxu0 0.0
      %790 = vmatpush.msra.mxu0 0.0
      %791 = vmatpush.msra.mxu0 0.0
      %792 = vmatpush.msra.mxu0 0.0
      %793 = vmatpush.msra.mxu0 %v756
      %794 = vmatmul.f32.gmra.mxu0 %v752
      %v795 = vpop.f32.mrf.mxu0
      %v796 = vadd.f32 0.0, %v795
      %797 = vdwg.mxu0
      %v798 = vadd.f32 %v728, %v776
      %v799 = vadd.f32 %v729, %v796
      %v800 = vld [vmem:[#allocation2] sm:$0xff]
      %v801 = vld [vmem:[#allocation2 + $0x8] sm:$0xf]
      %s802 = scalar_lea.vmem %s0, 64
      %v803 = vld [vmem:[%s802] sm:$0xff]
      %806 = vst [vmem:[#allocation1] ss:$2 sm:$0xff] %v800
      %s807 = scalar_lea.vmem [#allocation1], 16
      %808 = vst [vmem:[%s807] ss:$2 sm:$0xff] %v801
      %v809 = vld.sshfl [vmem:[#allocation1] sm:$0xff pattern:$0x75316420]
      %v810 = vld.sshfl [vmem:[#allocation1 + $0x8] sm:$0xff pattern:$0x75316420]
      %v811 = vld.sshfl [vmem:[#allocation1 + $0x10] sm:$0xff pattern:$0x75316420]
      %812 = vrot.lane.b32.xlu0 %v809, 90
      %v813 = vpop.permute.xlu0 %812
      %814 = vrot.lane.b32.xlu0 %v810, 90
      %v815 = vpop.permute.xlu0 %814
      %816 = vrot.lane.b32.xlu0 %v811, 90
      %v817 = vpop.permute.xlu0 %816
      %vm818 = vcmask 736256
      %v819 = vsel %vm818, %v813, %v815
      %v820 = vsel %vm818, %v815, %v817
      %v822 = vsel %vm280, %v803, 0
      %v824 = vsel %vm284, %v819, 0
      %v826 = vsel %vm284, %v820, 0
      %828 = vmatpush.msra.mxu0 0.0
      %829 = vmatpush.msra.mxu0 0.0
      %830 = vmatpush.msra.mxu0 0.0
      %831 = vmatpush.msra.mxu0 0.0
      %832 = vmatpush.msra.mxu0 0.0
      %833 = vmatpush.msra.mxu0 0.0
      %834 = vmatpush.msra.mxu0 0.0
      %835 = vmatpush.msra.mxu0 0.0
      %836 = vmatpush.msra.mxu0 0.0
      %837 = vmatpush.msra.mxu0 0.0
      %838 = vmatpush.msra.mxu0 0.0
      %839 = vmatpush.msra.mxu0 0.0
      %840 = vmatpush.msra.mxu0 0.0
      %841 = vmatpush.msra.mxu0 0.0
      %842 = vmatpush.msra.mxu0 0.0
      %843 = vmatpush.msra.mxu0 %v824
      %844 = vmatmul.f32.gmra.mxu0 %v822
      %v845 = vpop.f32.mrf.mxu0
      %v846 = vadd.f32 0.0, %v845
      %847 = vdwg.mxu0
      %848 = vmatpush.msra.mxu0 0.0
      %849 = vmatpush.msra.mxu0 0.0
      %850 = vmatpush.msra.mxu0 0.0
      %851 = vmatpush.msra.mxu0 0.0
      %852 = vmatpush.msra.mxu0 0.0
      %853 = vmatpush.msra.mxu0 0.0
      %854 = vmatpush.msra.mxu0 0.0
      %855 = vmatpush.msra.mxu0 0.0
      %856 = vmatpush.msra.mxu0 0.0
      %857 = vmatpush.msra.mxu0 0.0
      %858 = vmatpush.msra.mxu0 0.0
      %859 = vmatpush.msra.mxu0 0.0
      %860 = vmatpush.msra.mxu0 0.0
      %861 = vmatpush.msra.mxu0 0.0
      %862 = vmatpush.msra.mxu0 0.0
      %863 = vmatpush.msra.mxu0 %v826
      %864 = vmatmul.f32.gmra.mxu0 %v822
      %v865 = vpop.f32.mrf.mxu0
      %v866 = vadd.f32 0.0, %v865
      %867 = vdwg.mxu0
      %v868 = vadd.f32 %v798, %v846
      %v869 = vadd.f32 %v799, %v866
      %870 = vst [vmem:[%s251] sm:$0xff] %v868
      %871 = vst [vmem:[%s251 + $0x8] sm:$0xff] %v869
      %s872 = smul.u32 2, %s19
      %p873 = scmp.lt.s32.totalorder %s18, 1
      %s874 = scalar_select %p873, %s18, 1
      %p875 = scmp.lt.s32.totalorder %s872, 3
      %s876 = scalar_select %p875, %s872, 3
      %s877 = smul.addr %s874, 4
      %s878 = sadd.s32 %s876, %s877
      %s879 = smul.addr %s878, 8
      %s880 = scalar_lea.vmem %s3, %s879
      // Predicated region
      $region33: #{gabor_conv2d.1} parent=31 // pred_check
        %p881 = pneg %p125
      $region34: #{gabor_conv2d.1} parent=31 // pred_check_branch
        %883 = sbr.rel (%p881) target = $region36
      $region35: #{gabor_conv2d.1} parent=31 // pred_region
        %s884 = smul.u32 2, %s19
      $region36: #{gabor_conv2d.1} parent=31 // pred_fallthru
        _
    $region32: #{gabor_conv2d.1} parent=5 // pred_fallthru
      _
    %p885 = scmp.le.s32.totalorder 2, %s9
    // Predicated region
    $region37: #{gabor_conv2d.1} parent=5 // pred_check
      %p886 = pneg %p885
    $region38: #{gabor_conv2d.1} parent=5 // pred_check_branch
      %888 = sbr.rel (%p886) target = $region40
    $region39: #{gabor_conv2d.1} parent=5 // pred_region
      %s889 = ssub.s32 %s9, 2
      // Predicated region
      $region41: #{gabor_conv2d.1} parent=39 // pred_check
        %p890 = pneg %p131
      $region42: #{gabor_conv2d.1} parent=39 // pred_check_branch
        %892 = sbr.rel (%p890) target = $region44
      $region43: #{gabor_conv2d.1} parent=39 // pred_region
        %s893 = smul.u32 2, %s21
        %p894 = scmp.lt.s32.totalorder %s20, 1
        %s895 = scalar_select %p894, %s20, 1
        %p896 = scmp.lt.s32.totalorder %s893, 3
        %s897 = scalar_select %p896, %s893, 3
        %s898 = smul.addr %s895, 4
        %s899 = sadd.s32 %s897, %s898
        %s900 = smul.addr %s899, 8
        %s901 = scalar_lea.vmem %s3, %s900
      $region44: #{gabor_conv2d.1} parent=39 // pred_fallthru
        _
    $region40: #{gabor_conv2d.1} parent=5 // pred_fallthru
      _
  $region6: #{gabor_conv2d.1} parent=0 // loop_footer
    %s13 = sadd.s32 1, %s9
  $region7: #{gabor_conv2d.1} parent=0 // loop_footer_branch
    %8 = sbr.rel target = $region3
  $region8: #{gabor_conv2d.1} parent=0 // loop_exit
    _

</llo_original>
